<compile_context>
chip_gen: v6e
topology: v6e:2x2x1
jax: 0.10.0
libtpu: 0.0.40
codegen_flags: <defaults>
</compile_context>

<pallas_src>
import jax
import jax.numpy as jnp
from jax.experimental import pallas as pl
from jax.experimental.pallas import tpu as pltpu


def _viz_norm_kernel(x_ref, o_ref):
    # x_ref / o_ref: one (h, w) image tile (leading image dims squeezed away).
    x = x_ref[...].astype(jnp.float32)
    x_min = jnp.min(x, axis=(0, 1), keepdims=True)   # (1, 1)
    x_max = jnp.max(x, axis=(0, 1), keepdims=True)   # (1, 1)
    # 1 reciprocal per image on the EUP (otherwise-idle slot) instead of a
    # full-tile VPU divide.
    inv = pl.reciprocal(x_max - x_min + 1e-07, approx=True)
    o_ref[...] = ((x - x_min) * inv).astype(o_ref.dtype)


def visualize_layer_forward(x):
    """Reproduces VisualizeLayer.forward.

    Returns (x, x_img) where x is passed through unchanged and x_img has
    shape (25, 1, h, w) — the min-max normalized images the PyTorch module
    hands to viz.images.
    """
    n, c, h, w = x.shape
    assert n >= 5 and c >= 5, "VisualizeLayer slices x[:5, :5]"

    x_img = pl.pallas_call(
        _viz_norm_kernel,
        out_shape=jax.ShapeDtypeStruct((25, 1, h, w), x.dtype),
        grid=(5, 5),
        in_specs=[
            # Read image (i, j) of the NCHW input directly; no XLA-side
            # strided slice + reshape copy.
            pl.BlockSpec(
                (pl.Squeezed(), pl.Squeezed(), h, w),
                lambda i, j: (i, j, 0, 0),
            )
        ],
        out_specs=pl.BlockSpec(
            (pl.Squeezed(), pl.Squeezed(), h, w),
            lambda i, j: (i * 5 + j, 0, 0, 0),
        ),
        compiler_params=pltpu.CompilerParams(
            dimension_semantics=("parallel", "parallel"),
        ),
    )(x)

    # TODO(synk): viz.images(...) (visdom display side effect) has no Pallas
    # equivalent; the normalized image tensor is returned instead.
    return x, x_img


if __name__ == "__main__":
    key = jax.random.PRNGKey(0)
    # Small shapes consistent with the forward: need n >= 5, c >= 5.
    x = jax.random.normal(key, (6, 6, 16, 16), dtype=jnp.float32)

    out_x, out_img = visualize_layer_forward(x)
    jax.block_until_ready((out_x, out_img))

    # Sanity check against a pure-JAX reference of the same math.
    h, w = x.shape[2], x.shape[3]
    ref_flat = x[:5, :5].reshape(25, h * w)
    ref_min = ref_flat.min(axis=1, keepdims=True)
    ref_max = ref_flat.max(axis=1, keepdims=True)
    ref_img = ((ref_flat - ref_min) / (ref_max - ref_min + 1e-07)).reshape(25, 1, h, w)

    assert out_img.shape == (25, 1, h, w), "unexpected output shape"
    assert jnp.allclose(out_x, x), "pass-through output must equal input"
    # Tolerance loosened for the approx EUP reciprocal (~1e-3 relative error).
    assert jnp.allclose(out_img, ref_img, atol=5e-3, rtol=5e-3), "normalization mismatch"

    print("KERNEL_OK")
</pallas_src>

<mosaic_0001>
module attributes {stable_mosaic.version = 11 : i64} {
  func.func @_viz_norm_kernel(%arg0: i32, %arg1: i32, %arg2: memref<1x1x16x16xf32, #tpu.memory_space<vmem>>, %arg3: memref<1x1x16x16xf32, #tpu.memory_space<vmem>>) attributes {dimension_semantics = [#tpu.dimension_semantics<parallel>, #tpu.dimension_semantics<parallel>], iteration_bounds = array<i64: 5, 5>, scalar_prefetch = 0 : i64, scratch_operands = 0 : i64, tpu.core_type = #tpu.core_type<tc>, window_params = [{transform_indices = @transform_0, window_bounds = array<i64: 1, 1, 16, 16>}, {transform_indices = @transform_1, window_bounds = array<i64: 1, 1, 16, 16>}]} {
    %c0 = arith.constant 0 : index
    %c0_0 = arith.constant 0 : index
    %c0_1 = arith.constant 0 : index
    %c0_2 = arith.constant 0 : index
    %0 = vector.load %arg2[%c0, %c0_0, %c0_1, %c0_2] : memref<1x1x16x16xf32, #tpu.memory_space<vmem>>, vector<1x1x16x16xf32>
    %1 = vector.shape_cast %0 : vector<1x1x16x16xf32> to vector<16x16xf32>
    %2 = vector.shape_cast %1 : vector<16x16xf32> to vector<1x16x16xf32>
    %cst = arith.constant dense<0x7F800000> : vector<1xf32>
    %3 = vector.multi_reduction <minimumf>, %2, %cst [1, 2] : vector<1x16x16xf32> to vector<1xf32>
    %4 = vector.shape_cast %3 : vector<1xf32> to vector<1x1x1xf32>
    %5 = vector.extract %4[0, 0, 0] : f32 from vector<1x1x1xf32>
    %6 = vector.broadcast %5 : f32 to vector<1x1xf32>
    %7 = vector.shape_cast %1 : vector<16x16xf32> to vector<1x16x16xf32>
    %cst_3 = arith.constant dense<0xFF800000> : vector<1xf32>
    %8 = vector.multi_reduction <maximumf>, %7, %cst_3 [1, 2] : vector<1x16x16xf32> to vector<1xf32>
    %9 = vector.shape_cast %8 : vector<1xf32> to vector<1x1x1xf32>
    %10 = vector.extract %9[0, 0, 0] : f32 from vector<1x1x1xf32>
    %11 = vector.broadcast %10 : f32 to vector<1x1xf32>
    %12 = arith.subf %11, %6 : vector<1x1xf32>
    %cst_4 = arith.constant 1.000000e-07 : f32
    %13 = vector.broadcast %cst_4 : f32 to vector<1x1xf32>
    %14 = arith.addf %12, %13 : vector<1x1xf32>
    %15 = tpu.reciprocal %14 {approx = true} : vector<1x1xf32> -> vector<1x1xf32>
    %16 = vector.broadcast %6 : vector<1x1xf32> to vector<16x16xf32>
    %17 = arith.subf %1, %16 : vector<16x16xf32>
    %18 = vector.broadcast %15 : vector<1x1xf32> to vector<16x16xf32>
    %19 = arith.mulf %17, %18 : vector<16x16xf32>
    %c0_5 = arith.constant 0 : index
    %c0_6 = arith.constant 0 : index
    %c0_7 = arith.constant 0 : index
    %c0_8 = arith.constant 0 : index
    %20 = vector.load %arg3[%c0_5, %c0_6, %c0_7, %c0_8] : memref<1x1x16x16xf32, #tpu.memory_space<vmem>>, vector<1x1x16x16xf32>
    %21 = vector.shape_cast %20 : vector<1x1x16x16xf32> to vector<16x16xf32>
    %22 = vector.shape_cast %19 : vector<16x16xf32> to vector<1x1x16x16xf32>
    tpu.vector_store %arg3[%c0_5, %c0_6, %c0_7, %c0_8], %22 {strides = array<i32>} : memref<1x1x16x16xf32, #tpu.memory_space<vmem>>, vector<1x1x16x16xf32>,
    return
  }
  func.func @transform_0(%arg0: i32, %arg1: i32) -> (i32, i32, i32, i32) {
    %c0_i32 = arith.constant 0 : i32
    %c0_i32_0 = arith.constant 0 : i32
    %c0_i32_1 = arith.constant 0 : i32
    return %arg0, %arg1, %c0_i32, %c0_i32_0 : i32, i32, i32, i32
  }
  func.func @transform_1(%arg0: i32, %arg1: i32) -> (i32, i32, i32, i32) {
    %c5_i32 = arith.constant 5 : i32
    %0 = arith.muli %arg0, %c5_i32 : i32
    %1 = arith.addi %0, %arg1 : i32
    %c0_i32 = arith.constant 0 : i32
    %c0_i32_0 = arith.constant 0 : i32
    %c0_i32_1 = arith.constant 0 : i32
    %c0_i32_2 = arith.constant 0 : i32
    return %1, %c0_i32, %c0_i32_0, %c0_i32_1 : i32, i32, i32, i32
  }
}

</mosaic_0001>

<llo_original>
// kernel: tpu_custom_call.1
$region0: #{tpu_custom_call.1}
  #allocation0 [shape = 'u32[]', space=smem, size = 0x4, offset = 0x4, fixed_abs, tag = 'smem constant byte address 0x4 - core index']
  #allocation1 [shape = 'u32[144,128]{1,0:T(1,128)}', space=vmem, size = 0x12000, scoped, tag = 'internal scratch']
  %s0 = inlined_call_operand.hbm [shape: f32[6,6,16,16], index: 0, kind: input, shape index: {}]
  %s1 = inlined_call_operand.vmem [shape: f32[25,1,16,16], index: 1, kind: output, shape index: {}]
  %s2 = sld [smem:[#allocation0]]
  $region41: #{tpu_custom_call.1} parent=0
    _
  %s4 = ssub.s32 1, %s2
  %s5 = scalar_select 0, %s4, %s2
  $region1: #{tpu_custom_call.1} parent=0
    #allocation2 [shape = 'u8[16384]{0}', space=vmem, size = 0x4000, scoped, tag = 'input window, operand 0']
    #allocation3 [shape = 's32[2]{0}', space=sflag, size = 0x8, scoped, tag = 'scoped memory for tpu_custom_call.1']
    %6 = vsyncpa [#allocation3], 0
    %s7 = scalar_lea.sflag [#allocation3], 1
    %8 = vsyncpa %s7, 0
    loop: start=0, step=1, limit=27
    $region2: #{tpu_custom_call.1} parent=1 // loop_pre_header
      _
    $region3: #{tpu_custom_call.1} parent=1 // loop_header
      %s10 = sphi 0, %s14
      %p11 = scmp.ge.s32.totalorder %s10, 27
      %s17 = sphi 0, %s29
      %s18 = sphi 0, %s25
      %s19 = sphi 0, %s17
      %s20 = sphi 0, %s18
      %s21 = sphi 0, %s19
      %s22 = sphi 0, %s20
      %s34 = sphi 0, %s36
      %s37 = sphi 0, %s34
      %s38 = sphi 0, %s37
      %s54 = sphi 0, %s38
      %s64 = sphi 0, %s66
      %s67 = sphi 0, %s64
      %s68 = sphi 0, %s67
      %s84 = sphi 0, %s68
    $region4: #{tpu_custom_call.1} parent=1 // loop_header_branch
      %13 = sbr.rel (%p11) target = $region8
    $region5: #{tpu_custom_call.1} parent=1 // loop_body
      %s15 = ssub.s32 %s10, 1
      %s16 = ssub.s32 %s10, 2
      %s23 = sadd.s32 1, %s18
      %p24 = scmp.ge.s32.totalorder %s23, 5
      %s25 = scalar_select %p24, 0, %s23
      %s26 = sadd.s32 1, %s17
      %s27 = scalar_select %p24, %s26, %s17
      %p28 = scmp.ge.s32.totalorder %s27, 5
      %s29 = scalar_select %p28, 0, %s27
      %s30 = ssub.s32 %s17, %s29
      %s31 = ssub.s32 %s18, %s25
      %s32 = sor.u32 %s30, %s31
      %p33 = scmp.eq.s32.totalorder %s32, 0
      %s35 = sadd.s32 %s34, 1
      %s36 = scalar_select %p33, %s34, %s35
      %p39 = pneg %p33
      %p40 = scmp.eq.s32.totalorder %s10, 24
      %p41 = por %p39, %p40
      %p42 = scmp.ne.s32.totalorder %s34, %s37
      %p43 = scmp.eq.s32.totalorder %s10, 0
      %p44 = por %p42, %p43
      %p45 = scmp.ne.s32.totalorder %s34, %s37
      %p46 = scmp.eq.s32.totalorder %s15, 24
      %p47 = por %p45, %p46
      %p48 = scmp.ne.s32.totalorder %s37, %s38
      %p49 = scmp.eq.s32.totalorder %s15, 0
      %p50 = por %p48, %p49
      %p51 = scmp.ne.s32.totalorder %s37, %s38
      %p52 = scmp.eq.s32.totalorder %s16, 24
      %p53 = por %p51, %p52
      %p55 = scmp.ne.s32.totalorder %s38, %s54
      %p56 = scmp.eq.s32.totalorder %s16, 0
      %p57 = por %p55, %p56
      %s58 = smul.u32 %s17, 5
      %s59 = sadd.s32 %s58, %s18
      %s60 = smul.u32 %s29, 5
      %s61 = sadd.s32 %s60, %s25
      %s62 = ssub.s32 %s59, %s61
      %p63 = scmp.eq.s32.totalorder %s62, 0
      %s65 = sadd.s32 %s64, 1
      %s66 = scalar_select %p63, %s64, %s65
      %p69 = pneg %p63
      %p70 = scmp.eq.s32.totalorder %s10, 24
      %p71 = por %p69, %p70
      %p72 = scmp.ne.s32.totalorder %s64, %s67
      %p73 = scmp.eq.s32.totalorder %s10, 0
      %p74 = por %p72, %p73
      %p75 = scmp.ne.s32.totalorder %s64, %s67
      %p76 = scmp.eq.s32.totalorder %s15, 24
      %p77 = por %p75, %p76
      %p78 = scmp.ne.s32.totalorder %s67, %s68
      %p79 = scmp.eq.s32.totalorder %s15, 0
      %p80 = por %p78, %p79
      %p81 = scmp.ne.s32.totalorder %s67, %s68
      %p82 = scmp.eq.s32.totalorder %s16, 24
      %p83 = por %p81, %p82
      %p85 = scmp.ne.s32.totalorder %s68, %s84
      %p86 = scmp.eq.s32.totalorder %s16, 0
      %p87 = por %p85, %p86
      %p88 = scmp.le.s32.totalorder 1, %s10
      %p89 = scmp.lt.s32.totalorder %s10, 26
      %p90 = pnand %p88, %p89
      %p91 = pneg %p90
      // Predicated region
      $region9: #{tpu_custom_call.1} parent=5 // pred_check
        _
      $region10: #{tpu_custom_call.1} parent=5 // pred_check_branch
        %93 = sbr.rel (%p90) target = $region12
      $region11: #{tpu_custom_call.1} parent=5 // pred_region
        %s94 = ssub.s32 %s10, 1
      $region12: #{tpu_custom_call.1} parent=5 // pred_fallthru
        _
      %p95 = scmp.lt.s32.totalorder %s10, 25
      // Predicated region
      $region13: #{tpu_custom_call.1} parent=5 // pred_check
        %p96 = pneg %p95
      $region14: #{tpu_custom_call.1} parent=5 // pred_check_branch
        %98 = sbr.rel (%p96) target = $region16
      $region15: #{tpu_custom_call.1} parent=5 // pred_region
        // Predicated region
        $region17: #{tpu_custom_call.1} parent=15 // pred_check
          %p99 = pneg %p44
        $region18: #{tpu_custom_call.1} parent=15 // pred_check_branch
          %101 = sbr.rel (%p99) target = $region20
        $region19: #{tpu_custom_call.1} parent=15 // pred_region
          %s102 = sand.u32 %s34, 1
          %s103 = scalar_lea.sflag [#allocation3], %s102
          %s104 = sand.u32 %s34, 1
          %s105 = smul.addr %s104, 16
          %s106 = scalar_lea.vmem [#allocation2], %s105
          %s108 = ssub.s32 256, 256
          %109 = vsyncadd %s103, %s108
          %s110 = smul.addr %s18, 2
          %s111 = smul.addr %s17, 12
          %s112 = sadd.s32 %s110, %s111
          %s113 = smul.addr %s112, 128
          %s114 = scalar_lea.hbm %s0, %s113
          %s115 = sshll.u32 %s106, 4
          %s116 = int_to_ptr.vmem [resolvable:$true] %s115
          %121 = dma.hbm_to_vmem [thread:$0]  %s114, 256, %s116, %s103, 128, 128, 8
        $region20: #{tpu_custom_call.1} parent=15 // pred_fallthru
          _
      $region16: #{tpu_custom_call.1} parent=5 // pred_fallthru
        _
      %p122 = scmp.le.s32.totalorder 1, %s10
      %p123 = scmp.lt.s32.totalorder %s10, 26
      %p124 = pnand %p122, %p123
      %p125 = pneg %p124
      // Predicated region
      $region21: #{tpu_custom_call.1} parent=5 // pred_check
        _
      $region22: #{tpu_custom_call.1} parent=5 // pred_check_branch
        %127 = sbr.rel (%p124) target = $region24
      $region23: #{tpu_custom_call.1} parent=5 // pred_region
        %s128 = ssub.s32 %s10, 1
        %s129 = sand.u32 %s37, 1
        %s130 = scalar_lea.sflag [#allocation3], %s129
        %s131 = sand.u32 %s37, 1
        %s132 = smul.addr %s131, 16
        %s133 = scalar_lea.vmem [#allocation2], %s132
        // Predicated region
        $region25: #{tpu_custom_call.1} parent=23 // pred_check
          %p134 = pneg %p50
        $region26: #{tpu_custom_call.1} parent=23 // pred_check_branch
          %136 = sbr.rel (%p134) target = $region28
        $region27: #{tpu_custom_call.1} parent=23 // pred_region
          %137 = dma.done %s130, 256
        $region28: #{tpu_custom_call.1} parent=23 // pred_fallthru
          _
        %s138 = sand.u32 %s37, 1
        %s139 = scalar_lea.sflag [#allocation3], %s138
        %s140 = sand.u32 %s37, 1
        %s141 = smul.addr %s140, 16
        %s142 = scalar_lea.vmem [#allocation2], %s141
        %p143 = pneg %p50
        %p144 = pneg %p47
        %p145 = pneg %p80
        %p146 = pneg %p77
        %s147 = smul.u32 %s19, 5
        %s148 = sadd.s32 %s147, %s20
        %p149 = scmp.lt.s32.totalorder %s148, 24
        %s150 = scalar_select %p149, %s148, 24
        %s151 = smul.addr %s150, 2
        %s152 = smul.addr %s151, 8
        %s153 = scalar_lea.vmem %s1, %s152
        %s154 = smul.u32 %s19, 5
        %s155 = sadd.s32 %s154, %s20
        %p156 = scmp.lt.s32.totalorder %s155, 24
        %s157 = scalar_select %p156, %s155, 24
        %s158 = smul.addr %s157, 2
        %s159 = smul.addr %s158, 8
        %s160 = scalar_lea.vmem %s1, %s159
        %s161 = smul.u32 %s19, 5
        %s162 = sadd.s32 %s161, %s20
        %v163 = vld [vmem:[%s133] sm:$0xff]
        %v164 = vld [vmem:[%s133 + $0x8] sm:$0xff]
        %vm165 = vcmask 130048
        %v166 = vsel %vm165, %v163, inf
        %v167 = vsel %vm165, %v164, inf
        %v168 = vmin.f32 %v166, %v167
        %169 = vmin.xlane.f32.xlu0 %v168
        %v170 = vpop.xlane.xlu0 %169
        %v171 = vrot.slane %v170, 4
        %v172 = vmin.f32 %v170, %v171
        %v173 = vrot.slane %v172, 2
        %v174 = vmin.f32 %v172, %v173
        %v175 = vrot.slane %v174, 1
        %v176 = vmin.f32 %v174, %v175
        %s177 = vtos %v176
        %v178 = vstv %s177
        %v179 = vsel %vm165, %v163, -inf
        %v180 = vsel %vm165, %v164, -inf
        %v181 = vmax.f32 %v179, %v180
        %182 = vmax.xlane.f32.xlu0 %v181
        %v183 = vpop.xlane.xlu0 %182
        %v184 = vrot.slane %v183, 4
        %v185 = vmax.f32 %v183, %v184
        %v186 = vrot.slane %v185, 2
        %v187 = vmax.f32 %v185, %v186
        %v188 = vrot.slane %v187, 1
        %v189 = vmax.f32 %v187, %v188
        %s190 = vtos %v189
        %v191 = vstv %s190
        %v192 = vsub.f32 %v191, %v178
        %v193 = vadd.f32 %v192, 1e-07
        %v194 = vrcp.pop %v193
        %v195 = vsub.f32 %v163, %v178
        %v196 = vsub.f32 %v164, %v178
        %v197 = vmul.f32 %v195, %v194
        %v198 = vmul.f32 %v196, %v194
        %199 = vst.msk [vmem:[%s160] sm:$0xff] %vm165, %v197
        %200 = vst.msk [vmem:[%s160 + $0x8] sm:$0xff] %vm165, %v198
        %s201 = smul.u32 %s19, 5
        %s202 = sadd.s32 %s201, %s20
        %p203 = scmp.lt.s32.totalorder %s202, 24
        %s204 = scalar_select %p203, %s202, 24
        %s205 = smul.addr %s204, 2
        %s206 = smul.addr %s205, 8
        %s207 = scalar_lea.vmem %s1, %s206
        // Predicated region
        $region29: #{tpu_custom_call.1} parent=23 // pred_check
          %p208 = pneg %p77
        $region30: #{tpu_custom_call.1} parent=23 // pred_check_branch
          %210 = sbr.rel (%p208) target = $region32
        $region31: #{tpu_custom_call.1} parent=23 // pred_region
          %s211 = smul.u32 %s19, 5
          %s212 = sadd.s32 %s211, %s20
        $region32: #{tpu_custom_call.1} parent=23 // pred_fallthru
          _
      $region24: #{tpu_custom_call.1} parent=5 // pred_fallthru
        _
      %p213 = scmp.le.s32.totalorder 2, %s10
      // Predicated region
      $region33: #{tpu_custom_call.1} parent=5 // pred_check
        %p214 = pneg %p213
      $region34: #{tpu_custom_call.1} parent=5 // pred_check_branch
        %216 = sbr.rel (%p214) target = $region36
      $region35: #{tpu_custom_call.1} parent=5 // pred_region
        %s217 = ssub.s32 %s10, 2
        // Predicated region
        $region37: #{tpu_custom_call.1} parent=35 // pred_check
          %p218 = pneg %p83
        $region38: #{tpu_custom_call.1} parent=35 // pred_check_branch
          %220 = sbr.rel (%p218) target = $region40
        $region39: #{tpu_custom_call.1} parent=35 // pred_region
          %s221 = smul.u32 %s21, 5
          %s222 = sadd.s32 %s221, %s22
          %p223 = scmp.lt.s32.totalorder %s222, 24
          %s224 = scalar_select %p223, %s222, 24
          %s225 = smul.addr %s224, 2
          %s226 = smul.addr %s225, 8
          %s227 = scalar_lea.vmem %s1, %s226
        $region40: #{tpu_custom_call.1} parent=35 // pred_fallthru
          _
      $region36: #{tpu_custom_call.1} parent=5 // pred_fallthru
        _
    $region6: #{tpu_custom_call.1} parent=1 // loop_footer
      %s14 = sadd.s32 1, %s10
    $region7: #{tpu_custom_call.1} parent=1 // loop_footer_branch
      %9 = sbr.rel target = $region3
    $region8: #{tpu_custom_call.1} parent=1 // loop_exit
      _
    %228 = vsyncpa [#allocation3], 1
    %s229 = scalar_lea.sflag [#allocation3], 1
    %230 = vsyncpa %s229, 1

</llo_original>
